<compile_context>
chip_gen: v7x
topology: tpu7x:2x2x1
jax: 0.10.0
libtpu: 0.0.40
codegen_flags: <defaults>
</compile_context>

<pallas_src>
import jax
import jax.numpy as jnp
from jax.experimental import pallas as pl
from jax.experimental.pallas import tpu as pltpu

_LANE = 128
_TILE_BYTES = 2 * 1024 * 1024  # per-buffer tile budget; safe on v5e/v6e/v7x defaults


def _copy_kernel(x_ref, o_ref):
    # Identity copy of the current tile (the only "compute" of a view op).
    o_ref[...] = x_ref[...]


def _sublane_multiple(dtype) -> int:
    # Sub-32-bit dtypes pack along sublanes: 8 rows (f32), 16 (bf16), 32 (int8).
    itemsize = jnp.dtype(dtype).itemsize
    return max(8, 32 // max(1, itemsize))


def _pick_slab(n_elems, itemsize, sub):
    """Choose a lane-dense 2-D factoring (rows, cols) of n_elems.

    Prefers the widest cols (multiple of 128, capped so a minimal tile fits the
    budget) such that rows is a multiple of the dtype sublane packing; for
    small tensors falls back to a single full-extent block.  Returns None if no
    TPU-friendly factoring exists (caller then uses a metadata-only reshape).
    """
    if n_elems % _LANE != 0:
        return None
    c = n_elems // _LANE  # number of 128-lane groups
    max_d = max(1, min(c, (_TILE_BYTES // (sub * itemsize)) // _LANE))
    small_single_block = None
    for d in range(max_d, 0, -1):
        if c % d:
            continue
        cols = d * _LANE
        rows = n_elems // cols
        if rows % sub == 0:
            return rows, cols  # widest lane-dense slab with sublane-aligned rows
        if small_single_block is None and n_elems * itemsize <= _TILE_BYTES:
            small_single_block = (rows, cols)  # whole array as one block
    return small_single_block


def view_pallas(x, shape):
    """Equivalent of torch `x.view(shape)` with `shape` a single int."""
    out_shape = (int(shape),)
    n_elems = x.size
    assert n_elems == out_shape[0], f"view size mismatch: {n_elems} vs {shape}"

    itemsize = jnp.dtype(x.dtype).itemsize
    sub = _sublane_multiple(x.dtype)
    slab = _pick_slab(n_elems, itemsize, sub)
    if slab is None:
        # Ragged size: .view is metadata-only; reshape is exact and free.
        return jnp.reshape(x, out_shape)

    rows, cols = slab
    if rows % sub == 0:
        # Largest sublane-aligned row tile dividing rows within the budget.
        max_rt = max(sub, (_TILE_BYTES // (cols * itemsize)) // sub * sub)
        row_tile = sub
        for cand in range(min(rows, max_rt), sub - 1, -sub):
            if rows % cand == 0:
                row_tile = cand
                break
    else:
        row_tile = rows  # single full-extent block (small tensor)

    grid = rows // row_tile
    x2d = x.reshape(rows, cols)  # metadata-only reshape (glue)

    out2d = pl.pallas_call(
        _copy_kernel,
        out_shape=jax.ShapeDtypeStruct((rows, cols), x.dtype),
        grid=(grid,),
        in_specs=[pl.BlockSpec((row_tile, cols), lambda i: (i, 0))],
        out_specs=pl.BlockSpec((row_tile, cols), lambda i: (i, 0)),
        input_output_aliases={0: 0},  # output HBM buffer aliases the input
        cost_estimate=pl.CostEstimate(
            flops=0,
            transcendentals=0,
            bytes_accessed=2 * n_elems * itemsize,
        ),
        compiler_params=pltpu.CompilerParams(
            dimension_semantics=("parallel",),
        ),
    )(x2d)

    return out2d.reshape(out_shape)  # metadata-only reshape (glue)


if __name__ == "__main__":
    key = jax.random.PRNGKey(0)
    # Small NCHW input consistent with a conv-net feature map.
    B, C, H, W = 2, 4, 16, 16
    x = jax.random.normal(key, (B, C, H, W), dtype=jnp.float32)

    target_shape = B * C * H * W  # View(shape) with a single int -> flatten

    # Reference (== torch .view) computed before the aliasing kernel call.
    ref = jnp.reshape(x, (target_shape,))

    out = view_pallas(x, target_shape)
    out = jax.block_until_ready(out)

    assert out.shape == (target_shape,)
    assert out.dtype == x.dtype
    assert bool(jnp.all(out == ref))

    print("KERNEL_OK")
</pallas_src>

<mosaic_0001>
module attributes {stable_mosaic.version = 11 : i64} {
  func.func @_copy_kernel(%arg0: i32, %arg1: memref<8x256xf32, #tpu.memory_space<vmem>>, %arg2: memref<8x256xf32, #tpu.memory_space<vmem>>) attributes {dimension_semantics = [#tpu.dimension_semantics<parallel>], iteration_bounds = array<i64: 1>, scalar_prefetch = 0 : i64, scratch_operands = 0 : i64, tpu.core_type = #tpu.core_type<tc>, window_params = [{transform_indices = @transform_0, window_bounds = array<i64: 8, 256>}, {transform_indices = @transform_1, window_bounds = array<i64: 8, 256>}]} {
    %c0 = arith.constant 0 : index
    %c0_0 = arith.constant 0 : index
    %0 = vector.load %arg1[%c0, %c0_0] : memref<8x256xf32, #tpu.memory_space<vmem>>, vector<8x256xf32>
    %c0_1 = arith.constant 0 : index
    %c0_2 = arith.constant 0 : index
    %1 = vector.load %arg2[%c0_1, %c0_2] : memref<8x256xf32, #tpu.memory_space<vmem>>, vector<8x256xf32>
    tpu.vector_store %arg2[%c0_1, %c0_2], %0 {strides = array<i32>} : memref<8x256xf32, #tpu.memory_space<vmem>>, vector<8x256xf32>,
    return
  }
  func.func @transform_0(%arg0: i32) -> (i32, i32) {
    %c0_i32 = arith.constant 0 : i32
    %c0_i32_0 = arith.constant 0 : i32
    return %arg0, %c0_i32 : i32, i32
  }
  func.func @transform_1(%arg0: i32) -> (i32, i32) {
    %c0_i32 = arith.constant 0 : i32
    %c0_i32_0 = arith.constant 0 : i32
    return %arg0, %c0_i32 : i32, i32
  }
}

</mosaic_0001>

<llo_original>
// kernel: tpu_custom_call.1
$region0: #{tpu_custom_call.1}
  #allocation0 [shape = 'u32[]', space=smem, size = 0x4, offset = 0x4, fixed_abs, tag = 'smem constant byte address 0x4 - core index']
  #allocation1 [shape = 'u32[144,128]{1,0:T(1,128)}', space=vmem, size = 0x12000, scoped, tag = 'internal scratch']
  %s0 = inlined_call_operand.hbm [shape: f32[8,256], index: 0, kind: input, shape index: {}, may-alias: {0,1}]
  %s1 = inlined_call_operand.hbm [shape: f32[8,256], index: 1, kind: output, shape index: {}, may-alias: {0,1}]
  %s2 = sld [smem:[#allocation0]]
  $region18: #{tpu_custom_call.1} parent=0
    _
  %s4 = ssub.s32 1, %s2
  %s5 = scalar_select 0, %s4, %s2
  $region1: #{tpu_custom_call.1} parent=0
    #allocation2 [shape = 'u8[8192]{0}', space=vmem, size = 0x2000, scoped, tag = 'input window, operand 0, single buffered']
    #allocation3 [shape = 's32[1]{0}', space=sflag, size = 0x4, scoped, tag = 'scoped memory for tpu_custom_call.1']
    #allocation4 [shape = 's32[1]{0}', space=sflag, size = 0x4, scoped, tag = 'scoped memory for tpu_custom_call.1']
    #allocation5 [shape = 'u8[8192]{0}', space=vmem, size = 0x2000, scoped, tag = 'output window, operand 0, single buffered']
    %6 = vsyncpa [#allocation3], 0
    %7 = vsyncpa [#allocation4], 0
    // Predicated region
    $region2: #{tpu_custom_call.1} parent=1 // pred_check
      _
    $region3: #{tpu_custom_call.1} parent=1 // pred_check_branch
      %9 = sbr.rel (0) target = $region5
    $region4: #{tpu_custom_call.1} parent=1 // pred_region
      %s11 = ssub.s32 256, 256
      %12 = vsyncadd [#allocation3], %s11
      %s14 = sshll.u32 [#allocation2], 4
      %s15 = int_to_ptr.vmem [resolvable:$true] %s14
      %17 = dma.hbm_to_vmem [thread:$0]  %s0, 256, %s15, [#allocation3]
    $region5: #{tpu_custom_call.1} parent=1 // pred_fallthru
      _
    // Predicated region
    $region6: #{tpu_custom_call.1} parent=1 // pred_check
      _
    $region7: #{tpu_custom_call.1} parent=1 // pred_check_branch
      %19 = sbr.rel (0) target = $region9
    $region8: #{tpu_custom_call.1} parent=1 // pred_region
      %20 = dma.done [#allocation3], 256
    $region9: #{tpu_custom_call.1} parent=1 // pred_fallthru
      _
    %v21 = vld [vmem:[#allocation2] sm:$0xff]
    %v22 = vld [vmem:[#allocation2 + $0x8] sm:$0xff]
    %23 = vst [vmem:[#allocation5] sm:$0xff] %v21
    %24 = vst [vmem:[#allocation5 + $0x8] sm:$0xff] %v22
    // Predicated region
    $region10: #{tpu_custom_call.1} parent=1 // pred_check
      _
    $region11: #{tpu_custom_call.1} parent=1 // pred_check_branch
      %26 = sbr.rel (0) target = $region13
    $region12: #{tpu_custom_call.1} parent=1 // pred_region
      %s28 = ssub.s32 256, 256
      %29 = vsyncadd [#allocation4], %s28
      %s31 = sshll.u32 [#allocation5], 4
      %s32 = int_to_ptr.vmem [resolvable:$true] %s31
      %34 = dma.vmem_to_hbm [thread:$0]  %s32, 256, %s1, [#allocation4]
    $region13: #{tpu_custom_call.1} parent=1 // pred_fallthru
      _
    // Predicated region
    $region14: #{tpu_custom_call.1} parent=1 // pred_check
      _
    $region15: #{tpu_custom_call.1} parent=1 // pred_check_branch
      %36 = sbr.rel (0) target = $region17
    $region16: #{tpu_custom_call.1} parent=1 // pred_region
      %37 = dma.done [#allocation4], 256
    $region17: #{tpu_custom_call.1} parent=1 // pred_fallthru
      _
    %38 = vsyncpa [#allocation3], 1
    %39 = vsyncpa [#allocation4], 1

</llo_original>
